<compile_context>
chip_gen: v7x
topology: tpu7x:2x2x1
jax: 0.10.0
libtpu: 0.0.40
codegen_flags: <defaults>
</compile_context>

<pallas_src>
import functools

import jax
import jax.numpy as jnp
from jax.experimental import pallas as pl
from jax.experimental.pallas import tpu as pltpu

C_PAD = 128        # lane-dense feature/class width (full vreg lane dimension)
NEG_INF = -1e30    # finite mask for padded class columns (avoids inf-inf NaN)


def _round_up(x, m):
    return (x + m - 1) // m * m


# ---------------------------------------------------------------------------
# Fused kernel: every GCN layer in one pallas_call.
# grid = (num_layers, num_row_tiles); both axes are "arbitrary" because they
# carry sequential dependencies through the VMEM ping-pong activations.
#
#   a_ref : (N_pad, N_pad) int8  [resident]  or (TM, N_pad) int8 [streamed]
#           binary adjacency with self loops (values 0/1, exact)
#   x_ref : (N_pad, C_PAD) bf16  g0 = D^-1/2 x, padded (resident, DMA'd once)
#   d_ref : (N_pad, 1)     f32   d^-1/2 per node (resident)
#   w_ref : (1, C_PAD, C_PAD) bf16  BN-folded weight of layer l
#   b_ref : (1, 1, C_PAD)  f32   BN-folded bias (-1e30 in padded class cols
#                                of the last layer)
#   o_ref : (N_pad, C_PAD) f32   padded log_softmax output (resident)
#   h_ref : VMEM (2, N_pad, C_PAD) bf16  ping-pong activations g
# ---------------------------------------------------------------------------
def gcn_fused_kernel(a_ref, x_ref, d_ref, w_ref, b_ref, o_ref, h_ref,
                     *, tm, a_resident):
    layer = pl.program_id(0)
    tile = pl.program_id(1)
    num_layers = pl.num_programs(0)
    row0 = pl.multiple_of(tile * tm, tm)

    # Stage pre-scaled input features g0 = D^-1/2 x into ping buffer 0.
    @pl.when(jnp.logical_and(layer == 0, tile == 0))
    def _():
        h_ref[0] = x_ref[...]

    src = layer % 2          # buffer holding this layer's input g
    dst = 1 - src            # buffer receiving next layer's input g

    # Row tile of the binary (A + I).  int8 storage + bf16 cast are exact.
    if a_resident:
        a_tile = a_ref[pl.ds(row0, tm), :]
    else:
        a_tile = a_ref[...]
    a_tile = a_tile.astype(jnp.bfloat16)

    # agg = (A+I)[rows] @ g      (bf16 x bf16 MXU, f32 accumulation)
    agg = jnp.dot(a_tile, h_ref[src], preferred_element_type=jnp.float32)

    # z = (D_r^-1/2 * agg) @ W' + b'   (BN folded into W'/b'); the second
    # matmul is a local (TM,128)@(128,128) bf16 op -> no per-layer bubble.
    d_r = d_ref[pl.ds(row0, tm), :]                       # (tm, 1) f32
    z = jnp.dot((agg * d_r).astype(jnp.bfloat16), w_ref[0],
                preferred_element_type=jnp.float32) + b_ref[0]

    is_last = layer == num_layers - 1

    @pl.when(jnp.logical_not(is_last))
    def _():
        # Hidden layer: ReLU (dropout = identity in eval mode); pre-scale by
        # D^-1/2 so the next layer aggregates with the binary adjacency.
        h_ref[dst, pl.ds(row0, tm), :] = (
            d_r * jnp.maximum(z, 0.0)).astype(h_ref.dtype)

    @pl.when(is_last)
    def _():
        # f32 log_softmax epilogue (padded classes carry a -1e30 bias).
        m = jnp.max(z, axis=-1, keepdims=True)
        zz = z - m
        lse = jnp.log(jnp.sum(jnp.exp(zz), axis=-1, keepdims=True))
        o_ref[pl.ds(row0, tm), :] = zz - lse


# ---------------------------------------------------------------------------
# Wrapper: BN folding, lane/row padding, factored normalization, single
# pallas_call, output slice.
# ---------------------------------------------------------------------------
def _fold_and_pad_params(params):
    """Fold eval-mode BatchNorm into each conv's W/b and pad to C_PAD lanes."""
    num_layers = len(params)
    ws, bs = [], []
    for i, layer in enumerate(params):
        w = layer["w"].astype(jnp.float32)
        b = layer["b"].astype(jnp.float32)
        if i < num_layers - 1:
            # (A(xW)+b - mean)*gamma*rsqrt(var+eps) + beta
            #   == A(x(W*s)) + ((b-mean)*s + beta),  s = gamma*rsqrt(var+eps)
            scale = layer["gamma"] * jax.lax.rsqrt(layer["var"] + 1e-5)
            w = w * scale
            b = (b - layer["mean"]) * scale + layer["beta"]
        c_in, c_out = w.shape
        w_p = jnp.zeros((C_PAD, C_PAD), jnp.float32).at[:c_in, :c_out].set(w)
        fill = NEG_INF if i == num_layers - 1 else 0.0
        b_p = jnp.full((1, C_PAD), fill, jnp.float32).at[:, :c_out].set(b)
        ws.append(w_p)
        bs.append(b_p)
    # W' ships bf16 (MXU operand); biases / epilogue stay f32.
    return jnp.stack(ws).astype(jnp.bfloat16), jnp.stack(bs)   # (L,128,128),(L,1,128)


def _vmem_limit_bytes():
    cap = 64 * 1024 * 1024
    try:
        info = pltpu.get_tpu_info()
        cap = int(getattr(info, "vmem_capacity_bytes", cap) or cap)
    except Exception:
        pass
    # ~85% of physical: ≈54 MiB on v7x (64 MiB), capped at 100 MiB on
    # v5e/v6e (128 MiB) so bigger tiles / resident A are allowed there.
    return min(int(cap * 0.85), 100 * 1024 * 1024)


@functools.partial(jax.jit, static_argnames=("tm",))
def gcn_forward(x, adj, params, *, tm=256):
    """Eval-mode GCN forward: [conv -> BN -> ReLU]*(L-1) -> conv -> log_softmax.

    adj: dense binary adjacency WITH self loops (0/1 values).
    Everything runs in a single fused pallas_call.  `tm` is the node-row tile
    (256+ feeds the 256x256 MXU on v6e/v7x; 128-256 is fine on v5e).
    """
    n, c_in = x.shape
    num_layers = len(params)
    out_c = params[-1]["w"].shape[1]

    # Row tile: multiple of 32 (int8 A sublane packing); clamp to graph size.
    tm_eff = max(32, min(_round_up(int(tm), 32), _round_up(n, 32)))
    n_pad = _round_up(n, tm_eff)
    num_tiles = n_pad // tm_eff

    vmem_limit = _vmem_limit_bytes()
    # A resident (DMA'd once, reused across all layers) when it comfortably
    # fits VMEM next to the ping-pong activations; otherwise stream row tiles.
    a_resident = 2 * n_pad * n_pad <= vmem_limit // 2

    # Factored symmetric normalization: A_hat = D^-1/2 (A+I) D^-1/2.
    adj_f = adj.astype(jnp.float32)
    deg = jnp.sum(adj_f, axis=1)
    d_inv_sqrt = jnp.where(deg > 0, jax.lax.rsqrt(deg), 0.0)

    a_p = jnp.zeros((n_pad, n_pad), jnp.int8).at[:n, :n].set(
        adj_f.astype(jnp.int8))
    d_p = jnp.zeros((n_pad, 1), jnp.float32).at[:n, 0].set(d_inv_sqrt)
    # g0 = D^-1/2 x, zero-padded, bf16 (operand of the first aggregation).
    x_p = jnp.zeros((n_pad, C_PAD), jnp.float32).at[:n, :c_in].set(
        x * d_inv_sqrt[:, None]).astype(jnp.bfloat16)
    w_stk, b_stk = _fold_and_pad_params(params)

    if a_resident:
        a_spec = pl.BlockSpec((n_pad, n_pad), lambda l, r: (0, 0))
    else:
        a_spec = pl.BlockSpec((tm_eff, n_pad), lambda l, r: (r, 0))

    grid_spec = pltpu.PrefetchScalarGridSpec(
        num_scalar_prefetch=0,
        grid=(num_layers, num_tiles),
        in_specs=[
            a_spec,                                                   # A + I (int8)
            pl.BlockSpec((n_pad, C_PAD), lambda l, r: (0, 0)),        # g0 (resident)
            pl.BlockSpec((n_pad, 1), lambda l, r: (0, 0)),            # d^-1/2
            pl.BlockSpec((1, C_PAD, C_PAD), lambda l, r: (l, 0, 0)),  # W' of layer l
            pl.BlockSpec((1, 1, C_PAD), lambda l, r: (l, 0, 0)),      # b' of layer l
        ],
        out_specs=pl.BlockSpec((n_pad, C_PAD), lambda l, r: (0, 0)),  # resident out
        scratch_shapes=[
            pltpu.VMEM((2, n_pad, C_PAD), jnp.bfloat16),  # ping-pong activations g
        ],
    )

    kernel = functools.partial(gcn_fused_kernel, tm=tm_eff,
                               a_resident=a_resident)

    out_p = pl.pallas_call(
        kernel,
        out_shape=jax.ShapeDtypeStruct((n_pad, C_PAD), jnp.float32),
        grid_spec=grid_spec,
        compiler_params=pltpu.CompilerParams(
            # Both axes carry sequential deps through the VMEM ping-pong.
            # TODO(synk): v7x 2-TC split of the row-tile axis (core_map +
            # per-layer barrier on the g exchange) would be ~2x there.
            dimension_semantics=("arbitrary", "arbitrary"),
            vmem_limit_bytes=vmem_limit,
        ),
    )(a_p, x_p, d_p, w_stk, b_stk)

    return out_p[:n, :out_c]


# ---------------------------------------------------------------------------
# Pure-JAX reference (module semantics, f32, BN unfused) for validation.
# ---------------------------------------------------------------------------
def gcn_reference(x, adj, params):
    adj_f = adj.astype(jnp.float32)
    deg = jnp.sum(adj_f, axis=1)
    d = jnp.where(deg > 0, 1.0 / jnp.sqrt(deg), 0.0)
    a_hat = adj_f * d[:, None] * d[None, :]
    h = x
    for layer in params[:-1]:
        h = a_hat @ (h @ layer["w"]) + layer["b"]
        inv_std = jax.lax.rsqrt(layer["var"] + 1e-5)
        h = (h - layer["mean"]) * inv_std * layer["gamma"] + layer["beta"]
        h = jnp.maximum(h, 0.0)
    last = params[-1]
    h = a_hat @ (h @ last["w"]) + last["b"]
    return jax.nn.log_softmax(h, axis=-1)


# ---------------------------------------------------------------------------
# Deterministic setup (glue, plain JAX)
# ---------------------------------------------------------------------------
def build_adjacency(key, n):
    """Dense binary symmetric adjacency with self loops (values 0/1)."""
    a = jax.random.bernoulli(key, 0.1, (n, n)).astype(jnp.float32)
    a = jnp.maximum(a, a.T)                       # symmetrize
    a = a.at[jnp.diag_indices(n)].set(1.0)        # self loops
    return a


def init_params(key, in_channels, hidden_channels, out_channels, num_layers):
    dims = [in_channels] + [hidden_channels] * (num_layers - 1) + [out_channels]
    params = []
    for i in range(num_layers):
        c_in, c_out = dims[i], dims[i + 1]
        key, wk, bk, gk, bek, mk, vk = jax.random.split(key, 7)
        scale = jnp.sqrt(6.0 / (c_in + c_out))    # glorot-uniform-like
        w = jax.random.uniform(wk, (c_in, c_out), jnp.float32, -scale, scale)
        b = 0.1 * jax.random.normal(bk, (1, c_out), jnp.float32)
        layer = {"w": w, "b": b}
        if i < num_layers - 1:
            # Non-trivial BatchNorm1d eval-mode stats to exercise the BN fold.
            layer["gamma"] = jax.random.uniform(gk, (1, c_out), jnp.float32, 0.5, 1.5)
            layer["beta"] = 0.1 * jax.random.normal(bek, (1, c_out), jnp.float32)
            layer["mean"] = 0.1 * jax.random.normal(mk, (1, c_out), jnp.float32)
            layer["var"] = jax.random.uniform(vk, (1, c_out), jnp.float32, 0.5, 1.5)
        params.append(layer)
    return params


if __name__ == "__main__":
    N = 200                          # nodes (pads to 256 -> 2 row tiles of 128)
    IN_C, HID_C, OUT_C = 16, 32, 8
    NUM_LAYERS = 3
    # dropout p = 0.5 but module evaluated in eval mode -> identity

    key = jax.random.PRNGKey(0)
    k_x, k_a, k_p = jax.random.split(key, 3)

    x = jax.random.normal(k_x, (N, IN_C), jnp.float32)
    adj = build_adjacency(k_a, N)
    params = init_params(k_p, IN_C, HID_C, OUT_C, NUM_LAYERS)

    # tm=128 so the small example exercises the multi-row-tile ping-pong path.
    out = gcn_forward(x, adj, params, tm=128)
    out = jax.block_until_ready(out)

    assert out.shape == (N, OUT_C)

    # rows of log_softmax must exp-sum to 1 (padded classes masked to -1e30)
    row_sums = jnp.exp(out).sum(axis=-1)
    assert bool(jnp.all(jnp.abs(row_sums - 1.0) < 1e-4)), "row sums off"

    # compare against the pure-JAX f32 reference; A is exact int8 now, the
    # only low-precision operands are bf16 g / W' (f32 accumulation).
    ref = gcn_reference(x, adj, params)
    max_err = float(jnp.max(jnp.abs(out - ref)))
    assert max_err < 1e-1, f"max abs err vs reference: {max_err}"

    print("KERNEL_OK")
</pallas_src>

<mosaic_0001>
module attributes {stable_mosaic.version = 11 : i64} {
  func.func @gcn_fused_kernel(%arg0: i32, %arg1: i32, %arg2: memref<256x256xi8, #tpu.memory_space<vmem>>, %arg3: memref<256x128xbf16, #tpu.memory_space<vmem>>, %arg4: memref<256x1xf32, #tpu.memory_space<vmem>>, %arg5: memref<1x128x128xbf16, #tpu.memory_space<vmem>>, %arg6: memref<1x1x128xf32, #tpu.memory_space<vmem>>, %arg7: memref<256x128xf32, #tpu.memory_space<vmem>>, %arg8: memref<2x256x128xbf16, #tpu.memory_space<vmem>>) attributes {dimension_semantics = [#tpu.dimension_semantics<arbitrary>, #tpu.dimension_semantics<arbitrary>], iteration_bounds = array<i64: 3, 2>, scalar_prefetch = 0 : i64, scratch_operands = 1 : i64, tpu.core_type = #tpu.core_type<tc>, window_params = [{pipeline_mode = #tpu.pipeline_mode<synchronous>, transform_indices = @transform_0, window_bounds = array<i64: 256, 256>}, {pipeline_mode = #tpu.pipeline_mode<synchronous>, transform_indices = @transform_1, window_bounds = array<i64: 256, 128>}, {pipeline_mode = #tpu.pipeline_mode<synchronous>, transform_indices = @transform_2, window_bounds = array<i64: 256, 1>}, {transform_indices = @transform_3, window_bounds = array<i64: 1, 128, 128>}, {transform_indices = @transform_4, window_bounds = array<i64: 1, 1, 128>}, {pipeline_mode = #tpu.pipeline_mode<synchronous>, transform_indices = @transform_5, window_bounds = array<i64: 256, 128>}]} {
    %c128_i32 = arith.constant 128 : i32
    %0 = arith.muli %arg1, %c128_i32 : i32
    %1 = tpu.assume_multiple %0, 128 : i32
    %c0_i32 = arith.constant 0 : i32
    %2 = arith.cmpi eq, %arg0, %c0_i32 : i32
    %c0_i32_0 = arith.constant 0 : i32
    %3 = arith.cmpi eq, %arg1, %c0_i32_0 : i32
    %4 = arith.andi %2, %3 : i1
    %5 = arith.extui %4 : i1 to i32
    %c0_i32_1 = arith.constant 0 : i32
    %6 = arith.cmpi ne, %5, %c0_i32_1 : i32
    scf.if %6 {
      %c0_20 = arith.constant 0 : index
      %c0_21 = arith.constant 0 : index
      %43 = vector.load %arg3[%c0_20, %c0_21] : memref<256x128xbf16, #tpu.memory_space<vmem>>, vector<256x128xbf16>
      %c0_22 = arith.constant 0 : index
      %c0_23 = arith.constant 0 : index
      %c0_24 = arith.constant 0 : index
      %44 = vector.load %arg8[%c0_22, %c0_23, %c0_24] : memref<2x256x128xbf16, #tpu.memory_space<vmem>>, vector<1x256x128xbf16>
      %45 = vector.shape_cast %44 : vector<1x256x128xbf16> to vector<256x128xbf16>
      %46 = vector.shape_cast %43 : vector<256x128xbf16> to vector<1x256x128xbf16>
      tpu.vector_store %arg8[%c0_22, %c0_23, %c0_24], %46 {strides = array<i32>} : memref<2x256x128xbf16, #tpu.memory_space<vmem>>, vector<1x256x128xbf16>,
    } else {
    }
    %c2_i32 = arith.constant 2 : i32
    %c0_i32_2 = arith.constant 0 : i32
    %7 = arith.cmpi eq, %c2_i32, %c0_i32_2 : i32
    %c1_i32 = arith.constant 1 : i32
    %8 = arith.select %7, %c1_i32, %c2_i32 : i32
    %9 = arith.remsi %arg0, %8 : i32
    %c0_i32_3 = arith.constant 0 : i32
    %10 = arith.cmpi ne, %9, %c0_i32_3 : i32
    %c0_i32_4 = arith.constant 0 : i32
    %11 = arith.cmpi slt, %9, %c0_i32_4 : i32
    %c0_i32_5 = arith.constant 0 : i32
    %12 = arith.cmpi slt, %8, %c0_i32_5 : i32
    %13 = arith.xori %11, %12 : i1
    %14 = arith.andi %13, %10 : i1
    %15 = arith.addi %9, %8 : i32
    %16 = arith.select %14, %15, %9 : i32
    %c1_i32_6 = arith.constant 1 : i32
    %17 = arith.subi %c1_i32_6, %16 : i32
    %18 = arith.index_cast %1 : i32 to index
    %c0 = arith.constant 0 : index
    %19 = vector.load %arg2[%18, %c0] : memref<256x256xi8, #tpu.memory_space<vmem>>, vector<128x256xi8>
    %20 = arith.sitofp %19 : vector<128x256xi8> to vector<128x256xbf16>
    %21 = arith.index_cast %16 : i32 to index
    %c0_7 = arith.constant 0 : index
    %c0_8 = arith.constant 0 : index
    %22 = vector.load %arg8[%21, %c0_7, %c0_8] : memref<2x256x128xbf16, #tpu.memory_space<vmem>>, vector<1x256x128xbf16>
    %23 = vector.shape_cast %22 : vector<1x256x128xbf16> to vector<256x128xbf16>
    %cst = arith.constant dense<0.000000e+00> : vector<128x128xf32>
    %24 = tpu.matmul %20, %23, %cst {dimension_numbers = #tpu.dot_dimension_numbers<[1], [0], [0], [1], [0, 0, 1, 1], [], []>} : vector<128x256xbf16>, vector<256x128xbf16>, vector<128x128xf32> -> vector<128x128xf32>
    %25 = arith.index_cast %1 : i32 to index
    %c0_9 = arith.constant 0 : index
    %26 = vector.load %arg4[%25, %c0_9] : memref<256x1xf32, #tpu.memory_space<vmem>>, vector<128x1xf32>
    %27 = vector.broadcast %26 : vector<128x1xf32> to vector<128x128xf32>
    %28 = arith.mulf %24, %27 : vector<128x128xf32>
    %29 = arith.truncf %28 : vector<128x128xf32> to vector<128x128xbf16>
    %c0_10 = arith.constant 0 : index
    %c0_11 = arith.constant 0 : index
    %c0_12 = arith.constant 0 : index
    %30 = vector.load %arg5[%c0_10, %c0_11, %c0_12] : memref<1x128x128xbf16, #tpu.memory_space<vmem>>, vector<1x128x128xbf16>
    %31 = vector.shape_cast %30 : vector<1x128x128xbf16> to vector<128x128xbf16>
    %cst_13 = arith.constant dense<0.000000e+00> : vector<128x128xf32>
    %32 = tpu.matmul %29, %31, %cst_13 {dimension_numbers = #tpu.dot_dimension_numbers<[1], [0], [0], [1], [0, 0, 1, 1], [], []>} : vector<128x128xbf16>, vector<128x128xbf16>, vector<128x128xf32> -> vector<128x128xf32>
    %c0_14 = arith.constant 0 : index
    %c0_15 = arith.constant 0 : index
    %c0_16 = arith.constant 0 : index
    %33 = vector.load %arg6[%c0_14, %c0_15, %c0_16] : memref<1x1x128xf32, #tpu.memory_space<vmem>>, vector<1x1x128xf32>
    %34 = vector.shape_cast %33 : vector<1x1x128xf32> to vector<1x128xf32>
    %35 = vector.broadcast %34 : vector<1x128xf32> to vector<128x128xf32>
    %36 = arith.addf %32, %35 : vector<128x128xf32>
    %c2_i32_17 = arith.constant 2 : i32
    %37 = arith.cmpi eq, %arg0, %c2_i32_17 : i32
    %true = arith.constant true
    %38 = arith.xori %37, %true : i1
    %39 = arith.extui %38 : i1 to i32
    %c0_i32_18 = arith.constant 0 : i32
    %40 = arith.cmpi ne, %39, %c0_i32_18 : i32
    scf.if %40 {
      %cst_20 = arith.constant 0.000000e+00 : f32
      %43 = vector.broadcast %cst_20 : f32 to vector<128x128xf32>
      %44 = arith.maximumf %36, %43 : vector<128x128xf32>
      %45 = vector.broadcast %26 : vector<128x1xf32> to vector<128x128xf32>
      %46 = arith.mulf %45, %44 : vector<128x128xf32>
      %47 = arith.truncf %46 : vector<128x128xf32> to vector<128x128xbf16>
      %48 = arith.index_cast %17 : i32 to index
      %49 = arith.index_cast %1 : i32 to index
      %c0_21 = arith.constant 0 : index
      %50 = vector.load %arg8[%48, %49, %c0_21] : memref<2x256x128xbf16, #tpu.memory_space<vmem>>, vector<1x128x128xbf16>
      %51 = vector.shape_cast %50 : vector<1x128x128xbf16> to vector<128x128xbf16>
      %52 = vector.shape_cast %47 : vector<128x128xbf16> to vector<1x128x128xbf16>
      tpu.vector_store %arg8[%48, %49, %c0_21], %52 {strides = array<i32>} : memref<2x256x128xbf16, #tpu.memory_space<vmem>>, vector<1x128x128xbf16>,
    } else {
    }
    %41 = arith.extui %37 : i1 to i32
    %c0_i32_19 = arith.constant 0 : i32
    %42 = arith.cmpi ne, %41, %c0_i32_19 : i32
    scf.if %42 {
      %cst_20 = arith.constant dense<0xFF800000> : vector<128xf32>
      %43 = vector.multi_reduction <maximumf>, %36, %cst_20 [1] : vector<128x128xf32> to vector<128xf32>
      %44 = vector.shape_cast %43 : vector<128xf32> to vector<128x1xf32>
      %45 = vector.broadcast %44 : vector<128x1xf32> to vector<128x128xf32>
      %46 = arith.subf %36, %45 : vector<128x128xf32>
      %47 = math.exp %46 : vector<128x128xf32>
      %cst_21 = arith.constant dense<0.000000e+00> : vector<128xf32>
      %48 = vector.multi_reduction <add>, %47, %cst_21 [1] : vector<128x128xf32> to vector<128xf32>
      %49 = vector.shape_cast %48 : vector<128xf32> to vector<128x1xf32>
      %50 = math.log %49 : vector<128x1xf32>
      %51 = vector.broadcast %50 : vector<128x1xf32> to vector<128x128xf32>
      %52 = arith.subf %46, %51 : vector<128x128xf32>
      %53 = arith.index_cast %1 : i32 to index
      %c0_22 = arith.constant 0 : index
      %54 = vector.load %arg7[%53, %c0_22] : memref<256x128xf32, #tpu.memory_space<vmem>>, vector<128x128xf32>
      tpu.vector_store %arg7[%53, %c0_22], %52 {strides = array<i32>} : memref<256x128xf32, #tpu.memory_space<vmem>>, vector<128x128xf32>,
    } else {
    }
    return
  }
  func.func @transform_0(%arg0: i32, %arg1: i32) -> (i32, i32) {
    %c0_i32 = arith.constant 0 : i32
    %c0_i32_0 = arith.constant 0 : i32
    %c0_i32_1 = arith.constant 0 : i32
    return %c0_i32, %c0_i32_0 : i32, i32
  }
  func.func @transform_1(%arg0: i32, %arg1: i32) -> (i32, i32) {
    %c0_i32 = arith.constant 0 : i32
    %c0_i32_0 = arith.constant 0 : i32
    %c0_i32_1 = arith.constant 0 : i32
    return %c0_i32, %c0_i32_0 : i32, i32
  }
  func.func @transform_2(%arg0: i32, %arg1: i32) -> (i32, i32) {
    %c0_i32 = arith.constant 0 : i32
    %c0_i32_0 = arith.constant 0 : i32
    %c0_i32_1 = arith.constant 0 : i32
    return %c0_i32, %c0_i32_0 : i32, i32
  }
  func.func @transform_3(%arg0: i32, %arg1: i32) -> (i32, i32, i32) {
    %c0_i32 = arith.constant 0 : i32
    %c0_i32_0 = arith.constant 0 : i32
    %c0_i32_1 = arith.constant 0 : i32
    return %arg0, %c0_i32, %c0_i32_0 : i32, i32, i32
  }
  func.func @transform_4(%arg0: i32, %arg1: i32) -> (i32, i32, i32) {
    %c0_i32 = arith.constant 0 : i32
    %c0_i32_0 = arith.constant 0 : i32
    %c0_i32_1 = arith.constant 0 : i32
    return %arg0, %c0_i32, %c0_i32_0 : i32, i32, i32
  }
  func.func @transform_5(%arg0: i32, %arg1: i32) -> (i32, i32) {
    %c0_i32 = arith.constant 0 : i32
    %c0_i32_0 = arith.constant 0 : i32
    %c0_i32_1 = arith.constant 0 : i32
    return %c0_i32, %c0_i32_0 : i32, i32
  }
}

</mosaic_0001>

<llo_original>
// kernel: gcn_forward.1
$region0: #{gcn_forward.1}
  #allocation0 [shape = 'u32[]', space=smem, size = 0x4, offset = 0x4, fixed_abs, tag = 'smem constant byte address 0x4 - core index']
  #allocation1 [shape = 'u32[144,128]{1,0:T(1,128)}', space=vmem, size = 0x12000, scoped, tag = 'internal scratch']
  #allocation2 [shape = 'bf16[2,256,128]{2,1,0:T(16,128)(2,1)}', space=vmem, size = 0x20000, scoped, tag = 'scratch operand']
  %s0 = inlined_call_operand.vmem [shape: s8[256,256], index: 0, kind: input, shape index: {}]
  %s1 = inlined_call_operand.vmem [shape: bf16[256,128], index: 1, kind: input, shape index: {}]
  %s2 = inlined_call_operand.vmem [shape: f32[256,1], index: 2, kind: input, shape index: {}]
  %s3 = inlined_call_operand.vmem [shape: bf16[3,128,128], index: 3, kind: input, shape index: {}]
  %s4 = inlined_call_operand.vmem [shape: f32[3,1,128], index: 4, kind: input, shape index: {}]
  %s5 = inlined_call_operand.vmem [shape: f32[256,128], index: 5, kind: output, shape index: {}]
  %s6 = sld [smem:[#allocation0]]
  $region65: #{gcn_forward.1} parent=0
    _
  %s8 = ssub.s32 1, %s6
  %s9 = scalar_select 0, %s8, %s6
  loop: start=0, step=1, limit=8
  $region2: #{gcn_forward.1} parent=0 // loop_pre_header
    _
  $region3: #{gcn_forward.1} parent=0 // loop_header
    %s11 = sphi 0, %s15
    %p12 = scmp.ge.s32.totalorder %s11, 8
    %s18 = sphi 0, %s30
    %s19 = sphi 0, %s26
    %s20 = sphi 0, %s18
    %s21 = sphi 0, %s19
    %s22 = sphi 0, %s20
    %s23 = sphi 0, %s21
    %s31 = sphi 0, %s31
    %s33 = sphi 0, %s31
    %s34 = sphi 0, %s33
    %s48 = sphi 0, %s34
    %s52 = sphi 0, %s52
    %s54 = sphi 0, %s52
    %s55 = sphi 0, %s54
    %s69 = sphi 0, %s55
    %s73 = sphi 0, %s73
    %s75 = sphi 0, %s73
    %s76 = sphi 0, %s75
    %s90 = sphi 0, %s76
    %s96 = sphi 0, %s98
    %s99 = sphi 0, %s96
    %s100 = sphi 0, %s99
    %s116 = sphi 0, %s100
    %s122 = sphi 0, %s124
    %s125 = sphi 0, %s122
    %s126 = sphi 0, %s125
    %s142 = sphi 0, %s126
    %s146 = sphi 0, %s146
    %s148 = sphi 0, %s146
    %s149 = sphi 0, %s148
    %s163 = sphi 0, %s149
  $region4: #{gcn_forward.1} parent=0 // loop_header_branch
    %14 = sbr.rel (%p12) target = $region8
  $region5: #{gcn_forward.1} parent=0 // loop_body
    %s16 = ssub.s32 %s11, 1
    %s17 = ssub.s32 %s11, 2
    %s24 = sadd.s32 1, %s19
    %p25 = scmp.ge.s32.totalorder %s24, 2
    %s26 = scalar_select %p25, 0, %s24
    %s27 = sadd.s32 1, %s18
    %s28 = scalar_select %p25, %s27, %s18
    %p29 = scmp.ge.s32.totalorder %s28, 3
    %s30 = scalar_select %p29, 0, %s28
    %s32 = sadd.s32 %s31, 1
    %p35 = scmp.eq.s32.totalorder %s11, 5
    %p36 = scmp.ne.s32.totalorder %s31, %s33
    %p37 = scmp.eq.s32.totalorder %s11, 0
    %p38 = por %p36, %p37
    %p39 = scmp.ne.s32.totalorder %s31, %s33
    %p40 = scmp.eq.s32.totalorder %s16, 5
    %p41 = por %p39, %p40
    %p42 = scmp.ne.s32.totalorder %s33, %s34
    %p43 = scmp.eq.s32.totalorder %s16, 0
    %p44 = por %p42, %p43
    %p45 = scmp.ne.s32.totalorder %s33, %s34
    %p46 = scmp.eq.s32.totalorder %s17, 5
    %p47 = por %p45, %p46
    %p49 = scmp.ne.s32.totalorder %s34, %s48
    %p50 = scmp.eq.s32.totalorder %s17, 0
    %p51 = por %p49, %p50
    %s53 = sadd.s32 %s52, 1
    %p56 = scmp.eq.s32.totalorder %s11, 5
    %p57 = scmp.ne.s32.totalorder %s52, %s54
    %p58 = scmp.eq.s32.totalorder %s11, 0
    %p59 = por %p57, %p58
    %p60 = scmp.ne.s32.totalorder %s52, %s54
    %p61 = scmp.eq.s32.totalorder %s16, 5
    %p62 = por %p60, %p61
    %p63 = scmp.ne.s32.totalorder %s54, %s55
    %p64 = scmp.eq.s32.totalorder %s16, 0
    %p65 = por %p63, %p64
    %p66 = scmp.ne.s32.totalorder %s54, %s55
    %p67 = scmp.eq.s32.totalorder %s17, 5
    %p68 = por %p66, %p67
    %p70 = scmp.ne.s32.totalorder %s55, %s69
    %p71 = scmp.eq.s32.totalorder %s17, 0
    %p72 = por %p70, %p71
    %s74 = sadd.s32 %s73, 1
    %p77 = scmp.eq.s32.totalorder %s11, 5
    %p78 = scmp.ne.s32.totalorder %s73, %s75
    %p79 = scmp.eq.s32.totalorder %s11, 0
    %p80 = por %p78, %p79
    %p81 = scmp.ne.s32.totalorder %s73, %s75
    %p82 = scmp.eq.s32.totalorder %s16, 5
    %p83 = por %p81, %p82
    %p84 = scmp.ne.s32.totalorder %s75, %s76
    %p85 = scmp.eq.s32.totalorder %s16, 0
    %p86 = por %p84, %p85
    %p87 = scmp.ne.s32.totalorder %s75, %s76
    %p88 = scmp.eq.s32.totalorder %s17, 5
    %p89 = por %p87, %p88
    %p91 = scmp.ne.s32.totalorder %s76, %s90
    %p92 = scmp.eq.s32.totalorder %s17, 0
    %p93 = por %p91, %p92
    %s94 = ssub.s32 %s18, %s30
    %p95 = scmp.eq.s32.totalorder %s94, 0
    %s97 = sadd.s32 %s96, 1
    %s98 = scalar_select %p95, %s96, %s97
    %p101 = pneg %p95
    %p102 = scmp.eq.s32.totalorder %s11, 5
    %p103 = por %p101, %p102
    %p104 = scmp.ne.s32.totalorder %s96, %s99
    %p105 = scmp.eq.s32.totalorder %s11, 0
    %p106 = por %p104, %p105
    %p107 = scmp.ne.s32.totalorder %s96, %s99
    %p108 = scmp.eq.s32.totalorder %s16, 5
    %p109 = por %p107, %p108
    %p110 = scmp.ne.s32.totalorder %s99, %s100
    %p111 = scmp.eq.s32.totalorder %s16, 0
    %p112 = por %p110, %p111
    %p113 = scmp.ne.s32.totalorder %s99, %s100
    %p114 = scmp.eq.s32.totalorder %s17, 5
    %p115 = por %p113, %p114
    %p117 = scmp.ne.s32.totalorder %s100, %s116
    %p118 = scmp.eq.s32.totalorder %s17, 0
    %p119 = por %p117, %p118
    %s120 = ssub.s32 %s18, %s30
    %p121 = scmp.eq.s32.totalorder %s120, 0
    %s123 = sadd.s32 %s122, 1
    %s124 = scalar_select %p121, %s122, %s123
    %p127 = pneg %p121
    %p128 = scmp.eq.s32.totalorder %s11, 5
    %p129 = por %p127, %p128
    %p130 = scmp.ne.s32.totalorder %s122, %s125
    %p131 = scmp.eq.s32.totalorder %s11, 0
    %p132 = por %p130, %p131
    %p133 = scmp.ne.s32.totalorder %s122, %s125
    %p134 = scmp.eq.s32.totalorder %s16, 5
    %p135 = por %p133, %p134
    %p136 = scmp.ne.s32.totalorder %s125, %s126
    %p137 = scmp.eq.s32.totalorder %s16, 0
    %p138 = por %p136, %p137
    %p139 = scmp.ne.s32.totalorder %s125, %s126
    %p140 = scmp.eq.s32.totalorder %s17, 5
    %p141 = por %p139, %p140
    %p143 = scmp.ne.s32.totalorder %s126, %s142
    %p144 = scmp.eq.s32.totalorder %s17, 0
    %p145 = por %p143, %p144
    %s147 = sadd.s32 %s146, 1
    %p150 = scmp.eq.s32.totalorder %s11, 5
    %p151 = scmp.ne.s32.totalorder %s146, %s148
    %p152 = scmp.eq.s32.totalorder %s11, 0
    %p153 = por %p151, %p152
    %p154 = scmp.ne.s32.totalorder %s146, %s148
    %p155 = scmp.eq.s32.totalorder %s16, 5
    %p156 = por %p154, %p155
    %p157 = scmp.ne.s32.totalorder %s148, %s149
    %p158 = scmp.eq.s32.totalorder %s16, 0
    %p159 = por %p157, %p158
    %p160 = scmp.ne.s32.totalorder %s148, %s149
    %p161 = scmp.eq.s32.totalorder %s17, 5
    %p162 = por %p160, %p161
    %p164 = scmp.ne.s32.totalorder %s149, %s163
    %p165 = scmp.eq.s32.totalorder %s17, 0
    %p166 = por %p164, %p165
    %p167 = scmp.le.s32.totalorder 1, %s11
    %p168 = scmp.lt.s32.totalorder %s11, 7
    %p169 = pnand %p167, %p168
    %p170 = pneg %p169
    // Predicated region
    $region9: #{gcn_forward.1} parent=5 // pred_check
      _
    $region10: #{gcn_forward.1} parent=5 // pred_check_branch
      %172 = sbr.rel (%p169) target = $region12
    $region11: #{gcn_forward.1} parent=5 // pred_region
      %s173 = ssub.s32 %s11, 1
      // Predicated region
      $region13: #{gcn_forward.1} parent=11 // pred_check
        %p174 = pneg %p44
      $region14: #{gcn_forward.1} parent=11 // pred_check_branch
        %176 = sbr.rel (%p174) target = $region16
      $region15: #{gcn_forward.1} parent=11 // pred_region
        _
      $region16: #{gcn_forward.1} parent=11 // pred_fallthru
        _
      // Predicated region
      $region17: #{gcn_forward.1} parent=11 // pred_check
        %p177 = pneg %p65
      $region18: #{gcn_forward.1} parent=11 // pred_check_branch
        %179 = sbr.rel (%p177) target = $region20
      $region19: #{gcn_forward.1} parent=11 // pred_region
        _
      $region20: #{gcn_forward.1} parent=11 // pred_fallthru
        _
      // Predicated region
      $region21: #{gcn_forward.1} parent=11 // pred_check
        %p180 = pneg %p86
      $region22: #{gcn_forward.1} parent=11 // pred_check_branch
        %182 = sbr.rel (%p180) target = $region24
      $region23: #{gcn_forward.1} parent=11 // pred_region
        _
      $region24: #{gcn_forward.1} parent=11 // pred_fallthru
        _
    $region12: #{gcn_forward.1} parent=5 // pred_fallthru
      _
    %p183 = scmp.lt.s32.totalorder %s11, 6
    // Predicated region
    $region25: #{gcn_forward.1} parent=5 // pred_check
      %p184 = pneg %p183
    $region26: #{gcn_forward.1} parent=5 // pred_check_branch
      %186 = sbr.rel (%p184) target = $region28
    $region27: #{gcn_forward.1} parent=5 // pred_region
      // Predicated region
      $region29: #{gcn_forward.1} parent=27 // pred_check
        %p187 = pneg %p106
      $region30: #{gcn_forward.1} parent=27 // pred_check_branch
        %189 = sbr.rel (%p187) target = $region32
      $region31: #{gcn_forward.1} parent=27 // pred_region
        %p190 = scmp.lt.s32.totalorder %s18, 2
        %s191 = scalar_select %p190, %s18, 2
        %s192 = smul.addr %s191, 16
        %s193 = smul.addr %s192, 4
        %s194 = scalar_lea.vmem %s3, %s193
      $region32: #{gcn_forward.1} parent=27 // pred_fallthru
        _
      // Predicated region
      $region33: #{gcn_forward.1} parent=27 // pred_check
        %p195 = pneg %p132
      $region34: #{gcn_forward.1} parent=27 // pred_check_branch
        %197 = sbr.rel (%p195) target = $region36
      $region35: #{gcn_forward.1} parent=27 // pred_region
        %p198 = scmp.lt.s32.totalorder %s18, 2
        %s199 = scalar_select %p198, %s18, 2
        %s200 = scalar_lea.vmem %s4, %s199
      $region36: #{gcn_forward.1} parent=27 // pred_fallthru
        _
    $region28: #{gcn_forward.1} parent=5 // pred_fallthru
      _
    %p201 = scmp.le.s32.totalorder 1, %s11
    %p202 = scmp.lt.s32.totalorder %s11, 7
    %p203 = pnand %p201, %p202
    %p204 = pneg %p203
    // Predicated region
    $region37: #{gcn_forward.1} parent=5 // pred_check
      _
    $region38: #{gcn_forward.1} parent=5 // pred_check_branch
      %206 = sbr.rel (%p203) target = $region40
    $region39: #{gcn_forward.1} parent=5 // pred_region
      %s207 = ssub.s32 %s11, 1
      %p208 = pneg %p44
      %p209 = pneg %p41
      %p210 = pneg %p65
      %p211 = pneg %p62
      %p212 = pneg %p86
      %p213 = pneg %p83
      %p214 = scmp.lt.s32.totalorder %s20, 2
      %s215 = scalar_select %p214, %s20, 2
      %s216 = smul.addr %s215, 16
      %s217 = smul.addr %s216, 4
      %s218 = scalar_lea.vmem %s3, %s217
      %p219 = pneg %p112
      %p220 = pneg %p109
      %p221 = scmp.lt.s32.totalorder %s20, 2
      %s222 = scalar_select %p221, %s20, 2
      %s223 = scalar_lea.vmem %s4, %s222
      %p224 = pneg %p138
      %p225 = pneg %p135
      %p226 = pneg %p159
      %p227 = pneg %p156
      %p228 = scmp.lt.s32.totalorder %s20, 2
      %s229 = scalar_select %p228, %s20, 2
      %s230 = smul.addr %s229, 16
      %s231 = smul.addr %s230, 4
      %s232 = scalar_lea.vmem %s3, %s231
      %p233 = scmp.lt.s32.totalorder %s20, 2
      %s234 = scalar_select %p233, %s20, 2
      %s235 = scalar_lea.vmem %s4, %s234
      %s237 = smul.u32 %s21, 128
      %p238 = scmp.eq.s32.totalorder %s20, 0
      %p239 = scmp.eq.s32.totalorder %s21, 0
      %p240 = pnand %p238, %p239
      %p241 = pneg %p240
      // Predicated region
      $region41: #{gcn_forward.1} parent=39 // pred_check
        _
      $region42: #{gcn_forward.1} parent=39 // pred_check_branch
        %243 = sbr.rel (%p240) target = $region44
      $region43: #{gcn_forward.1} parent=39 // pred_region
        %v244 = vld [vmem:[%s1] sm:$0xf]
        %v245 = vld [vmem:[%s1 + $0x4] sm:$0xf]
        %v246 = vld [vmem:[%s1 + $0x8] sm:$0xf]
        %v247 = vld [vmem:[%s1 + $0xc] sm:$0xf]
        %v248 = vld [vmem:[%s1 + $0x10] sm:$0xf]
        %v249 = vld [vmem:[%s1 + $0x14] sm:$0xf]
        %v250 = vld [vmem:[%s1 + $0x18] sm:$0xf]
        %v251 = vld [vmem:[%s1 + $0x1c] sm:$0xf]
        %v252 = vld [vmem:[%s1 + $0x20] sm:$0xf]
        %v253 = vld [vmem:[%s1 + $0x24] sm:$0xf]
        %v254 = vld [vmem:[%s1 + $0x28] sm:$0xf]
        %v255 = vld [vmem:[%s1 + $0x2c] sm:$0xf]
        %v256 = vld [vmem:[%s1 + $0x30] sm:$0xf]
        %v257 = vld [vmem:[%s1 + $0x34] sm:$0xf]
        %v258 = vld [vmem:[%s1 + $0x38] sm:$0xf]
        %v259 = vld [vmem:[%s1 + $0x3c] sm:$0xf]
        %v260 = vld [vmem:[%s1 + $0x40] sm:$0xf]
        %v261 = vld [vmem:[%s1 + $0x44] sm:$0xf]
        %v262 = vld [vmem:[%s1 + $0x48] sm:$0xf]
        %v263 = vld [vmem:[%s1 + $0x4c] sm:$0xf]
        %v264 = vld [vmem:[%s1 + $0x50] sm:$0xf]
        %v265 = vld [vmem:[%s1 + $0x54] sm:$0xf]
        %v266 = vld [vmem:[%s1 + $0x58] sm:$0xf]
        %v267 = vld [vmem:[%s1 + $0x5c] sm:$0xf]
        %v268 = vld [vmem:[%s1 + $0x60] sm:$0xf]
        %v269 = vld [vmem:[%s1 + $0x64] sm:$0xf]
        %v270 = vld [vmem:[%s1 + $0x68] sm:$0xf]
        %v271 = vld [vmem:[%s1 + $0x6c] sm:$0xf]
        %v272 = vld [vmem:[%s1 + $0x70] sm:$0xf]
        %v273 = vld [vmem:[%s1 + $0x74] sm:$0xf]
        %v274 = vld [vmem:[%s1 + $0x78] sm:$0xf]
        %v275 = vld [vmem:[%s1 + $0x7c] sm:$0xf]
        %v308 = vunpack.c.l.b16 %v244
        %v309 = vunpack.c.l.b16 %v245
        %v310 = vunpack.c.l.b16 %v246
        %v311 = vunpack.c.l.b16 %v247
        %v312 = vunpack.c.l.b16 %v248
        %v313 = vunpack.c.l.b16 %v249
        %v314 = vunpack.c.l.b16 %v250
        %v315 = vunpack.c.l.b16 %v251
        %v316 = vunpack.c.l.b16 %v252
        %v317 = vunpack.c.l.b16 %v253
        %v318 = vunpack.c.l.b16 %v254
        %v319 = vunpack.c.l.b16 %v255
        %v320 = vunpack.c.l.b16 %v256
        %v321 = vunpack.c.l.b16 %v257
        %v322 = vunpack.c.l.b16 %v258
        %v323 = vunpack.c.l.b16 %v259
        %v324 = vunpack.c.l.b16 %v260
        %v325 = vunpack.c.l.b16 %v261
        %v326 = vunpack.c.l.b16 %v262
        %v327 = vunpack.c.l.b16 %v263
        %v328 = vunpack.c.l.b16 %v264
        %v329 = vunpack.c.l.b16 %v265
        %v330 = vunpack.c.l.b16 %v266
        %v331 = vunpack.c.l.b16 %v267
        %v332 = vunpack.c.l.b16 %v268
        %v333 = vunpack.c.l.b16 %v269
        %v334 = vunpack.c.l.b16 %v270
        %v335 = vunpack.c.l.b16 %v271
        %v336 = vunpack.c.l.b16 %v272
        %v337 = vunpack.c.l.b16 %v273
        %v338 = vunpack.c.l.b16 %v274
        %v339 = vunpack.c.l.b16 %v275
        %v340 = vpack.c.b16 %v309, %v308
        %v341 = vpack.c.b16 %v311, %v310
        %v342 = vpack.c.b16 %v313, %v312
        %v343 = vpack.c.b16 %v315, %v314
        %v344 = vpack.c.b16 %v317, %v316
        %v345 = vpack.c.b16 %v319, %v318
        %v346 = vpack.c.b16 %v321, %v320
        %v347 = vpack.c.b16 %v323, %v322
        %v348 = vpack.c.b16 %v325, %v324
        %v349 = vpack.c.b16 %v327, %v326
        %v350 = vpack.c.b16 %v329, %v328
        %v351 = vpack.c.b16 %v331, %v330
        %v352 = vpack.c.b16 %v333, %v332
        %v353 = vpack.c.b16 %v335, %v334
        %v354 = vpack.c.b16 %v337, %v336
        %v355 = vpack.c.b16 %v339, %v338
        %372 = vst [vmem:[#allocation2] sm:$0xff] %v340
        %373 = vst [vmem:[#allocation2 + $0x8] sm:$0xff] %v341
        %374 = vst [vmem:[#allocation2 + $0x10] sm:$0xff] %v342
        %375 = vst [vmem:[#allocation2 + $0x18] sm:$0xff] %v343
        %376 = vst [vmem:[#allocation2 + $0x20] sm:$0xff] %v344
        %377 = vst [vmem:[#allocation2 + $0x28] sm:$0xff] %v345
        %378 = vst [vmem:[#allocation2 + $0x30] sm:$0xff] %v346
        %379 = vst [vmem:[#allocation2 + $0x38] sm:$0xff] %v347
        %380 = vst [vmem:[#allocation2 + $0x40] sm:$0xff] %v348
        %381 = vst [vmem:[#allocation2 + $0x48] sm:$0xff] %v349
        %382 = vst [vmem:[#allocation2 + $0x50] sm:$0xff] %v350
        %383 = vst [vmem:[#allocation2 + $0x58] sm:$0xff] %v351
        %384 = vst [vmem:[#allocation2 + $0x60] sm:$0xff] %v352
        %385 = vst [vmem:[#allocation2 + $0x68] sm:$0xff] %v353
        %386 = vst [vmem:[#allocation2 + $0x70] sm:$0xff] %v354
        %387 = vst [vmem:[#allocation2 + $0x78] sm:$0xff] %v355
      $region44: #{gcn_forward.1} parent=39 // pred_fallthru
        _
      %p388 = scmp.lt.s32.totalorder %s20, 0
      %s389 = ssub.s32 0, %s20
      %s390 = scalar_select %p388, %s389, %s20
      %s391 = sand.u32 %s390, 1
      %s392 = ssub.s32 0, %s391
      %s393 = scalar_select %p388, %s392, %s391
      %p394 = scmp.ne.s32.totalorder %s393, 0
      %p395 = scmp.lt.s32.totalorder %s393, 0
      %p396 = pnand %p395, %p394
      %p397 = pneg %p396
      %s398 = sadd.s32 %s393, 2
      %s399 = scalar_select %p397, %s398, %s393
      %s400 = ssub.s32 1, %s399
      %s401 = sshra.s32 %s237, 5
      %s402 = sand.u32 %s237, 31
      %s403 = smul.u32 %s401, 2
      %s404 = smul.addr %s403, 8
      %s405 = scalar_lea.vmem %s0, %s404
      %v406 = vld [vmem:[%s405] sm:$0xff]
      %v407 = vld [vmem:[%s405 + $0x8] sm:$0xff]
      %v408 = vld [vmem:[%s405 + $0x10] sm:$0xff]
      %v409 = vld [vmem:[%s405 + $0x18] sm:$0xff]
      %v410 = vld [vmem:[%s405 + $0x20] sm:$0xff]
      %v411 = vld [vmem:[%s405 + $0x28] sm:$0xff]
      %v412 = vld [vmem:[%s405 + $0x30] sm:$0xff]
      %v413 = vld [vmem:[%s405 + $0x38] sm:$0xff]
      %v414 = vunpack.c.l.s8.bf16 %v406
      %v415 = vunpack.c.l.s8.bf16 %v407
      %v416 = vunpack.c.h.s8.bf16 %v406
      %v417 = vunpack.c.h.s8.bf16 %v407
      %v418 = vunpack.c.l.s8.bf16 %v408
      %v419 = vunpack.c.l.s8.bf16 %v409
      %v420 = vunpack.c.h.s8.bf16 %v408
      %v421 = vunpack.c.h.s8.bf16 %v409
      %v422 = vunpack.c.l.s8.bf16 %v410
      %v423 = vunpack.c.l.s8.bf16 %v411
      %v424 = vunpack.c.h.s8.bf16 %v410
      %v425 = vunpack.c.h.s8.bf16 %v411
      %v426 = vunpack.c.l.s8.bf16 %v412
      %v427 = vunpack.c.l.s8.bf16 %v413
      %v428 = vunpack.c.h.s8.bf16 %v412
      %v429 = vunpack.c.h.s8.bf16 %v413
      %s430 = smul.u32 %s399, 16
      %s431 = smul.addr %s430, 8
      %s432 = scalar_lea.vmem [#allocation2], %s431
      %v433 = vld [vmem:[%s432] sm:$0xff]
      %v434 = vld [vmem:[%s432 + $0x8] sm:$0xff]
      %v435 = vld [vmem:[%s432 + $0x10] sm:$0xff]
      %v436 = vld [vmem:[%s432 + $0x18] sm:$0xff]
      %v437 = vld [vmem:[%s432 + $0x20] sm:$0xff]
      %v438 = vld [vmem:[%s432 + $0x28] sm:$0xff]
      %v439 = vld [vmem:[%s432 + $0x30] sm:$0xff]
      %v440 = vld [vmem:[%s432 + $0x38] sm:$0xff]
      %v441 = vld [vmem:[%s432 + $0x40] sm:$0xff]
      %v442 = vld [vmem:[%s432 + $0x48] sm:$0xff]
      %v443 = vld [vmem:[%s432 + $0x50] sm:$0xff]
      %v444 = vld [vmem:[%s432 + $0x58] sm:$0xff]
      %v445 = vld [vmem:[%s432 + $0x60] sm:$0xff]
      %v446 = vld [vmem:[%s432 + $0x68] sm:$0xff]
      %v447 = vld [vmem:[%s432 + $0x70] sm:$0xff]
      %v448 = vld [vmem:[%s432 + $0x78] sm:$0xff]
      %449 = vmatprep.subr.bf16.mxu0 0
      %450 = vmatpush1.bf16.msra.mxu0 %v433
      %451 = vmatprep.subr.bf16.mxu0 0
      %452 = vmatpush1.bf16.msra.mxu0 %v434
      %453 = vmatprep.subr.bf16.mxu0 0
      %454 = vmatpush1.bf16.msra.mxu0 %v435
      %455 = vmatprep.subr.bf16.mxu0 0
      %456 = vmatpush1.bf16.msra.mxu0 %v436
      %457 = vmatprep.subr.bf16.mxu0 0
      %458 = vmatpush1.bf16.msra.mxu0 %v437
      %459 = vmatprep.subr.bf16.mxu0 0
      %460 = vmatpush1.bf16.msra.mxu0 %v438
      %461 = vmatprep.subr.bf16.mxu0 0
      %462 = vmatpush1.bf16.msra.mxu0 %v439
      %463 = vmatprep.subr.bf16.mxu0 0
      %464 = vmatpush1.bf16.msra.mxu0 %v440
      %465 = vmatprep.subr.bf16.mxu0 0
      %466 = vmatpush1.bf16.msra.mxu0 %v441
      %467 = vmatprep.subr.bf16.mxu0 0
      %468 = vmatpush1.bf16.msra.mxu0 %v442
      %469 = vmatprep.subr.bf16.mxu0 0
      %470 = vmatpush1.bf16.msra.mxu0 %v443
      %471 = vmatprep.subr.bf16.mxu0 0
      %472 = vmatpush1.bf16.msra.mxu0 %v444
      %473 = vmatprep.subr.bf16.mxu0 0
      %474 = vmatpush1.bf16.msra.mxu0 %v445
      %475 = vmatprep.subr.bf16.mxu0 0
      %476 = vmatpush1.bf16.msra.mxu0 %v446
      %477 = vmatprep.subr.bf16.mxu0 0
      %478 = vmatpush1.bf16.msra.mxu0 %v447
      %479 = vmatprep.subr.bf16.mxu0 0
      %480 = vmatpush1.bf16.msra.mxu0 %v448
      %481 = vmatprep.mubr.bf16.mxu0 %v415
      %482 = vmatmul.mubr.bf16.gmra.mrb[0].mxu0 %v414
      %v483 = vpop.f32.mrb[0].mxu0
      %v484 = vadd.f32 0.0, %v483
      %v485 = vpop.f32.mrb[0].mxu0
      %v486 = vpop.f32.mrb[0].mxu0
      %v487 = vadd.f32 0.0, %v486
      %v488 = vpop.f32.mrb[0].mxu0
      %489 = vmatprep.mubr.bf16.mxu0 %v417
      %490 = vmatmul.mubr.bf16.gmra.mrb[0].mxu0 %v416
      %v491 = vpop.f32.mrb[0].mxu0
      %v492 = vadd.f32 0.0, %v491
      %v493 = vpop.f32.mrb[0].mxu0
      %v494 = vpop.f32.mrb[0].mxu0
      %v495 = vadd.f32 0.0, %v494
      %v496 = vpop.f32.mrb[0].mxu0
      %497 = vmatprep.mubr.bf16.mxu0 %v419
      %498 = vmatmul.mubr.bf16.gmra.mrb[0].mxu0 %v418
      %v499 = vpop.f32.mrb[0].mxu0
      %v500 = vadd.f32 0.0, %v499
      %v501 = vpop.f32.mrb[0].mxu0
      %v502 = vpop.f32.mrb[0].mxu0
      %v503 = vadd.f32 0.0, %v502
      %v504 = vpop.f32.mrb[0].mxu0
      %505 = vmatprep.mubr.bf16.mxu0 %v421
      %506 = vmatmul.mubr.bf16.gmra.mrb[0].mxu0 %v420
      %v507 = vpop.f32.mrb[0].mxu0
      %v508 = vadd.f32 0.0, %v507
      %v509 = vpop.f32.mrb[0].mxu0
      %v510 = vpop.f32.mrb[0].mxu0
      %v511 = vadd.f32 0.0, %v510
      %v512 = vpop.f32.mrb[0].mxu0
      %513 = vmatprep.mubr.bf16.mxu0 %v423
      %514 = vmatmul.mubr.bf16.gmra.mrb[0].mxu0 %v422
      %v515 = vpop.f32.mrb[0].mxu0
      %v516 = vadd.f32 0.0, %v515
      %v517 = vpop.f32.mrb[0].mxu0
      %v518 = vpop.f32.mrb[0].mxu0
      %v519 = vadd.f32 0.0, %v518
      %v520 = vpop.f32.mrb[0].mxu0
      %521 = vmatprep.mubr.bf16.mxu0 %v425
      %522 = vmatmul.mubr.bf16.gmra.mrb[0].mxu0 %v424
      %v523 = vpop.f32.mrb[0].mxu0
      %v524 = vadd.f32 0.0, %v523
      %v525 = vpop.f32.mrb[0].mxu0
      %v526 = vpop.f32.mrb[0].mxu0
      %v527 = vadd.f32 0.0, %v526
      %v528 = vpop.f32.mrb[0].mxu0
      %529 = vmatprep.mubr.bf16.mxu0 %v427
      %530 = vmatmul.mubr.bf16.gmra.mrb[0].mxu0 %v426
      %v531 = vpop.f32.mrb[0].mxu0
      %v532 = vadd.f32 0.0, %v531
      %v533 = vpop.f32.mrb[0].mxu0
      %v534 = vpop.f32.mrb[0].mxu0
      %v535 = vadd.f32 0.0, %v534
      %v536 = vpop.f32.mrb[0].mxu0
      %537 = vmatprep.mubr.bf16.mxu0 %v429
      %538 = vmatmul.mubr.bf16.gmra.mrb[0].mxu0 %v428
      %v539 = vpop.f32.mrb[0].mxu0
      %v540 = vadd.f32 0.0, %v539
      %v541 = vpop.f32.mrb[0].mxu0
      %v542 = vpop.f32.mrb[0].mxu0
      %v543 = vadd.f32 0.0, %v542
      %v544 = vpop.f32.mrb[0].mxu0
      %545 = vdwg.mxu0
      %s546 = scalar_lea.vmem %s2, %s237
      %v547 = vld [vmem:[%s546] sm:$0xff]
      %v548 = vld [vmem:[%s546 + $0x8] sm:$0xff]
      %v549 = vld [vmem:[%s546 + $0x10] sm:$0xff]
      %v550 = vld [vmem:[%s546 + $0x18] sm:$0xff]
      %v551 = vld [vmem:[%s546 + $0x20] sm:$0xff]
      %v552 = vld [vmem:[%s546 + $0x28] sm:$0xff]
      %v553 = vld [vmem:[%s546 + $0x30] sm:$0xff]
      %v554 = vld [vmem:[%s546 + $0x38] sm:$0xff]
      %v555 = vld [vmem:[%s546 + $0x40] sm:$0xff]
      %v556 = vld [vmem:[%s546 + $0x48] sm:$0xff]
      %v557 = vld [vmem:[%s546 + $0x50] sm:$0xff]
      %v558 = vld [vmem:[%s546 + $0x58] sm:$0xff]
      %v559 = vld [vmem:[%s546 + $0x60] sm:$0xff]
      %v560 = vld [vmem:[%s546 + $0x68] sm:$0xff]
      %v561 = vld [vmem:[%s546 + $0x70] sm:$0xff]
      %v562 = vld [vmem:[%s546 + $0x78] sm:$0xff]
      %564 = vset.pattern.permute.xlu0 0
      %565 = vperm.xlu0 %564, %v547
      %v566 = vpop.permute.xlu0 %565
      %569 = vset.pattern.permute.xlu0 0
      %570 = vperm.xlu0 %569, %v548
      %v571 = vpop.permute.xlu0 %570
      %574 = vset.pattern.permute.xlu0 0
      %575 = vperm.xlu0 %574, %v549
      %v576 = vpop.permute.xlu0 %575
      %579 = vset.pattern.permute.xlu0 0
      %580 = vperm.xlu0 %579, %v550
      %v581 = vpop.permute.xlu0 %580
      %584 = vset.pattern.permute.xlu0 0
      %585 = vperm.xlu0 %584, %v551
      %v586 = vpop.permute.xlu0 %585
      %589 = vset.pattern.permute.xlu0 0
      %590 = vperm.xlu0 %589, %v552
      %v591 = vpop.permute.xlu0 %590
      %594 = vset.pattern.permute.xlu0 0
      %595 = vperm.xlu0 %594, %v553
      %v596 = vpop.permute.xlu0 %595
      %599 = vset.pattern.permute.xlu0 0
      %600 = vperm.xlu0 %599, %v554
      %v601 = vpop.permute.xlu0 %600
      %604 = vset.pattern.permute.xlu0 0
      %605 = vperm.xlu0 %604, %v555
      %v606 = vpop.permute.xlu0 %605
      %609 = vset.pattern.permute.xlu0 0
      %610 = vperm.xlu0 %609, %v556
      %v611 = vpop.permute.xlu0 %610
      %614 = vset.pattern.permute.xlu0 0
      %615 = vperm.xlu0 %614, %v557
      %v616 = vpop.permute.xlu0 %615
      %619 = vset.pattern.permute.xlu0 0
      %620 = vperm.xlu0 %619, %v558
      %v621 = vpop.permute.xlu0 %620
      %624 = vset.pattern.permute.xlu0 0
      %625 = vperm.xlu0 %624, %v559
      %v626 = vpop.permute.xlu0 %625
      %629 = vset.pattern.permute.xlu0 0
      %630 = vperm.xlu0 %629, %v560
      %v631 = vpop.permute.xlu0 %630
      %634 = vset.pattern.permute.xlu0 0
      %635 = vperm.xlu0 %634, %v561
      %v636 = vpop.permute.xlu0 %635
      %639 = vset.pattern.permute.xlu0 0
      %640 = vperm.xlu0 %639, %v562
      %v641 = vpop.permute.xlu0 %640
      %v643 = vmul.f32 %v484, %v566
      %v644 = vmul.f32 %v487, %v571
      %v645 = vmul.f32 %v492, %v576
      %v646 = vmul.f32 %v495, %v581
      %v647 = vmul.f32 %v500, %v586
      %v648 = vmul.f32 %v503, %v591
      %v649 = vmul.f32 %v508, %v596
      %v650 = vmul.f32 %v511, %v601
      %v651 = vmul.f32 %v516, %v606
      %v652 = vmul.f32 %v519, %v611
      %v653 = vmul.f32 %v524, %v616
      %v654 = vmul.f32 %v527, %v621
      %v655 = vmul.f32 %v532, %v626
      %v656 = vmul.f32 %v535, %v631
      %v657 = vmul.f32 %v540, %v636
      %v658 = vmul.f32 %v543, %v641
      %v659 = vpack.c.bf16 %v644, %v643
      %v660 = vpack.c.bf16 %v646, %v645
      %v661 = vpack.c.bf16 %v648, %v647
      %v662 = vpack.c.bf16 %v650, %v649
      %v663 = vpack.c.bf16 %v652, %v651
      %v664 = vpack.c.bf16 %v654, %v653
      %v665 = vpack.c.bf16 %v656, %v655
      %v666 = vpack.c.bf16 %v658, %v657
      %v667 = vld [vmem:[%s232] sm:$0xf]
      %v668 = vld [vmem:[%s232 + $0x4] sm:$0xf]
      %v669 = vld [vmem:[%s232 + $0x8] sm:$0xf]
      %v670 = vld [vmem:[%s232 + $0xc] sm:$0xf]
      %v671 = vld [vmem:[%s232 + $0x10] sm:$0xf]
      %v672 = vld [vmem:[%s232 + $0x14] sm:$0xf]
      %v673 = vld [vmem:[%s232 + $0x18] sm:$0xf]
      %v674 = vld [vmem:[%s232 + $0x1c] sm:$0xf]
      %v675 = vld [vmem:[%s232 + $0x20] sm:$0xf]
      %v676 = vld [vmem:[%s232 + $0x24] sm:$0xf]
      %v677 = vld [vmem:[%s232 + $0x28] sm:$0xf]
      %v678 = vld [vmem:[%s232 + $0x2c] sm:$0xf]
      %v679 = vld [vmem:[%s232 + $0x30] sm:$0xf]
      %v680 = vld [vmem:[%s232 + $0x34] sm:$0xf]
      %v681 = vld [vmem:[%s232 + $0x38] sm:$0xf]
      %v682 = vld [vmem:[%s232 + $0x3c] sm:$0xf]
      %v683 = vld [vmem:[%s235] sm:$0x1]
      %v685 = vlaneseq
      %v686 = vshrl.u32 %v685, 7
      %v687 = vsub.s32 0, %v686
      %v688 = vrot.slane %v683, %v687
      %v706 = vunpack.c.l.b16 %v667
      %v707 = vunpack.c.l.b16 %v668
      %v708 = vunpack.c.l.b16 %v669
      %v709 = vunpack.c.l.b16 %v670
      %v710 = vunpack.c.l.b16 %v671
      %v711 = vunpack.c.l.b16 %v672
      %v712 = vunpack.c.l.b16 %v673
      %v713 = vunpack.c.l.b16 %v674
      %v714 = vunpack.c.l.b16 %v675
      %v715 = vunpack.c.l.b16 %v676
      %v716 = vunpack.c.l.b16 %v677
      %v717 = vunpack.c.l.b16 %v678
      %v718 = vunpack.c.l.b16 %v679
      %v719 = vunpack.c.l.b16 %v680
      %v720 = vunpack.c.l.b16 %v681
      %v721 = vunpack.c.l.b16 %v682
      %v722 = vpack.c.b16 %v707, %v706
      %v723 = vpack.c.b16 %v709, %v708
      %v724 = vpack.c.b16 %v711, %v710
      %v725 = vpack.c.b16 %v713, %v712
      %v726 = vpack.c.b16 %v715, %v714
      %v727 = vpack.c.b16 %v717, %v716
      %v728 = vpack.c.b16 %v719, %v718
      %v729 = vpack.c.b16 %v721, %v720
      %738 = vmatprep.subr.bf16.mxu0 0
      %739 = vmatpush1.bf16.msra.mxu0 %v722
      %740 = vmatprep.subr.bf16.mxu0 0
      %741 = vmatpush1.bf16.msra.mxu0 %v723
      %742 = vmatprep.subr.bf16.mxu0 0
      %743 = vmatpush1.bf16.msra.mxu0 %v724
      %744 = vmatprep.subr.bf16.mxu0 0
      %745 = vmatpush1.bf16.msra.mxu0 %v725
      %746 = vmatprep.subr.bf16.mxu0 0
      %747 = vmatpush1.bf16.msra.mxu0 %v726
      %748 = vmatprep.subr.bf16.mxu0 0
      %749 = vmatpush1.bf16.msra.mxu0 %v727
      %750 = vmatprep.subr.bf16.mxu0 0
      %751 = vmatpush1.bf16.msra.mxu0 %v728
      %752 = vmatprep.subr.bf16.mxu0 0
      %753 = vmatpush1.bf16.msra.mxu0 %v729
      %754 = vmatprep.subr.bf16.mxu0 0
      %755 = vmatpush1.bf16.msra.mxu0 0
      %756 = vmatprep.subr.bf16.mxu0 0
      %757 = vmatpush1.bf16.msra.mxu0 0
      %758 = vmatprep.subr.bf16.mxu0 0
      %759 = vmatpush1.bf16.msra.mxu0 0
      %760 = vmatprep.subr.bf16.mxu0 0
      %761 = vmatpush1.bf16.msra.mxu0 0
      %762 = vmatprep.subr.bf16.mxu0 0
      %763 = vmatpush1.bf16.msra.mxu0 0
      %764 = vmatprep.subr.bf16.mxu0 0
      %765 = vmatpush1.bf16.msra.mxu0 0
      %766 = vmatprep.subr.bf16.mxu0 0
      %767 = vmatpush1.bf16.msra.mxu0 0
      %768 = vmatprep.subr.bf16.mxu0 0
      %769 = vmatpush1.bf16.msra.mxu0 0
      %770 = vmatprep.mubr.bf16.mxu0 0
      %771 = vmatmul.mubr.bf16.gmra.mrb[0].mxu0 %v659
      %v772 = vpop.f32.mrb[0].mxu0
      %v773 = vadd.f32 %v688, %v772
      %v774 = vpop.f32.mrb[0].mxu0
      %v775 = vpop.f32.mrb[0].mxu0
      %v776 = vadd.f32 %v688, %v775
      %v777 = vpop.f32.mrb[0].mxu0
      %778 = vmatprep.mubr.bf16.mxu0 0
      %779 = vmatmul.mubr.bf16.gmra.mrb[0].mxu0 %v660
      %v780 = vpop.f32.mrb[0].mxu0
      %v781 = vadd.f32 %v688, %v780
      %v782 = vpop.f32.mrb[0].mxu0
      %v783 = vpop.f32.mrb[0].mxu0
      %v784 = vadd.f32 %v688, %v783
      %v785 = vpop.f32.mrb[0].mxu0
      %786 = vmatprep.mubr.bf16.mxu0 0
      %787 = vmatmul.mubr.bf16.gmra.mrb[0].mxu0 %v661
      %v788 = vpop.f32.mrb[0].mxu0
      %v789 = vadd.f32 %v688, %v788
      %v790 = vpop.f32.mrb[0].mxu0
      %v791 = vpop.f32.mrb[0].mxu0
      %v792 = vadd.f32 %v688, %v791
      %v793 = vpop.f32.mrb[0].mxu0
      %794 = vmatprep.mubr.bf16.mxu0 0
      %795 = vmatmul.mubr.bf16.gmra.mrb[0].mxu0 %v662
      %v796 = vpop.f32.mrb[0].mxu0
      %v797 = vadd.f32 %v688, %v796
      %v798 = vpop.f32.mrb[0].mxu0
      %v799 = vpop.f32.mrb[0].mxu0
      %v800 = vadd.f32 %v688, %v799
      %v801 = vpop.f32.mrb[0].mxu0
      %802 = vmatprep.mubr.bf16.mxu0 0
      %803 = vmatmul.mubr.bf16.gmra.mrb[0].mxu0 %v663
      %v804 = vpop.f32.mrb[0].mxu0
      %v805 = vadd.f32 %v688, %v804
      %v806 = vpop.f32.mrb[0].mxu0
      %v807 = vpop.f32.mrb[0].mxu0
      %v808 = vadd.f32 %v688, %v807
      %v809 = vpop.f32.mrb[0].mxu0
      %810 = vmatprep.mubr.bf16.mxu0 0
      %811 = vmatmul.mubr.bf16.gmra.mrb[0].mxu0 %v664
      %v812 = vpop.f32.mrb[0].mxu0
      %v813 = vadd.f32 %v688, %v812
      %v814 = vpop.f32.mrb[0].mxu0
      %v815 = vpop.f32.mrb[0].mxu0
      %v816 = vadd.f32 %v688, %v815
      %v817 = vpop.f32.mrb[0].mxu0
      %818 = vmatprep.mubr.bf16.mxu0 0
      %819 = vmatmul.mubr.bf16.gmra.mrb[0].mxu0 %v665
      %v820 = vpop.f32.mrb[0].mxu0
      %v821 = vadd.f32 %v688, %v820
      %v822 = vpop.f32.mrb[0].mxu0
      %v823 = vpop.f32.mrb[0].mxu0
      %v824 = vadd.f32 %v688, %v823
      %v825 = vpop.f32.mrb[0].mxu0
      %826 = vmatprep.mubr.bf16.mxu0 0
      %827 = vmatmul.mubr.bf16.gmra.mrb[0].mxu0 %v666
      %v828 = vpop.f32.mrb[0].mxu0
      %v829 = vadd.f32 %v688, %v828
      %v830 = vpop.f32.mrb[0].mxu0
      %v831 = vpop.f32.mrb[0].mxu0
      %v832 = vadd.f32 %v688, %v831
      %v833 = vpop.f32.mrb[0].mxu0
      %834 = vdwg.mxu0
      %p835 = scmp.eq.s32.totalorder %s20, 2
      %p836 = scmp.ne.s32.totalorder %s20, 2
      // Predicated region
      $region45: #{gcn_forward.1} parent=39 // pred_check
        %p837 = pneg %p836
      $region46: #{gcn_forward.1} parent=39 // pred_check_branch
        %839 = sbr.rel (%p837) target = $region48
      $region47: #{gcn_forward.1} parent=39 // pred_region
        %v840 = vmax.f32 %v773, 0.0
        %v841 = vmax.f32 %v776, 0.0
        %v842 = vmax.f32 %v781, 0.0
        %v843 = vmax.f32 %v784, 0.0
        %v844 = vmax.f32 %v789, 0.0
        %v845 = vmax.f32 %v792, 0.0
        %v846 = vmax.f32 %v797, 0.0
        %v847 = vmax.f32 %v800, 0.0
        %v848 = vmax.f32 %v805, 0.0
        %v849 = vmax.f32 %v808, 0.0
        %v850 = vmax.f32 %v813, 0.0
        %v851 = vmax.f32 %v816, 0.0
        %v852 = vmax.f32 %v821, 0.0
        %v853 = vmax.f32 %v824, 0.0
        %v854 = vmax.f32 %v829, 0.0
        %v855 = vmax.f32 %v832, 0.0
        %v856 = vmul.f32 %v566, %v840
        %v857 = vmul.f32 %v571, %v841
        %v858 = vmul.f32 %v576, %v842
        %v859 = vmul.f32 %v581, %v843
        %v860 = vmul.f32 %v586, %v844
        %v861 = vmul.f32 %v591, %v845
        %v862 = vmul.f32 %v596, %v846
        %v863 = vmul.f32 %v601, %v847
        %v864 = vmul.f32 %v606, %v848
        %v865 = vmul.f32 %v611, %v849
        %v866 = vmul.f32 %v616, %v850
        %v867 = vmul.f32 %v621, %v851
        %v868 = vmul.f32 %v626, %v852
        %v869 = vmul.f32 %v631, %v853
        %v870 = vmul.f32 %v636, %v854
        %v871 = vmul.f32 %v641, %v855
        %v872 = vpack.c.bf16 %v857, %v856
        %v873 = vpack.c.bf16 %v859, %v858
        %v874 = vpack.c.bf16 %v861, %v860
        %v875 = vpack.c.bf16 %v863, %v862
        %v876 = vpack.c.bf16 %v865, %v864
        %v877 = vpack.c.bf16 %v867, %v866
        %v878 = vpack.c.bf16 %v869, %v868
        %v879 = vpack.c.bf16 %v871, %v870
        %s880 = sshra.s32 %s237, 4
        %s881 = sand.u32 %s237, 15
        %s882 = smul.u32 %s400, 16
        %s883 = sadd.s32 %s880, %s882
        %s884 = smul.addr %s883, 8
        %s885 = scalar_lea.vmem [#allocation2], %s884
        %886 = vst [vmem:[%s885] sm:$0xff] %v872
        %887 = vst [vmem:[%s885 + $0x8] sm:$0xff] %v873
        %888 = vst [vmem:[%s885 + $0x10] sm:$0xff] %v874
        %889 = vst [vmem:[%s885 + $0x18] sm:$0xff] %v875
        %890 = vst [vmem:[%s885 + $0x20] sm:$0xff] %v876
        %891 = vst [vmem:[%s885 + $0x28] sm:$0xff] %v877
        %892 = vst [vmem:[%s885 + $0x30] sm:$0xff] %v878
        %893 = vst [vmem:[%s885 + $0x38] sm:$0xff] %v879
      $region48: #{gcn_forward.1} parent=39 // pred_fallthru
        _
      // Predicated region
      $region49: #{gcn_forward.1} parent=39 // pred_check
        %p894 = pneg %p835
      $region50: #{gcn_forward.1} parent=39 // pred_check_branch
        %896 = sbr.rel (%p894) target = $region52
      $region51: #{gcn_forward.1} parent=39 // pred_region
        %897 = vmax.xlane.f32.xlu0 %v773
        %v898 = vpop.xlane.xlu0 %897
        %899 = vmax.xlane.f32.xlu0 %v776
        %v900 = vpop.xlane.xlu0 %899
        %901 = vmax.xlane.f32.xlu0 %v781
        %v902 = vpop.xlane.xlu0 %901
        %903 = vmax.xlane.f32.xlu0 %v784
        %v904 = vpop.xlane.xlu0 %903
        %905 = vmax.xlane.f32.xlu0 %v789
        %v906 = vpop.xlane.xlu0 %905
        %907 = vmax.xlane.f32.xlu0 %v792
        %v908 = vpop.xlane.xlu0 %907
        %909 = vmax.xlane.f32.xlu0 %v797
        %v910 = vpop.xlane.xlu0 %909
        %911 = vmax.xlane.f32.xlu0 %v800
        %v912 = vpop.xlane.xlu0 %911
        %913 = vmax.xlane.f32.xlu0 %v805
        %v914 = vpop.xlane.xlu0 %913
        %915 = vmax.xlane.f32.xlu0 %v808
        %v916 = vpop.xlane.xlu0 %915
        %917 = vmax.xlane.f32.xlu0 %v813
        %v918 = vpop.xlane.xlu0 %917
        %919 = vmax.xlane.f32.xlu0 %v816
        %v920 = vpop.xlane.xlu0 %919
        %921 = vmax.xlane.f32.xlu0 %v821
        %v922 = vpop.xlane.xlu0 %921
        %923 = vmax.xlane.f32.xlu0 %v824
        %v924 = vpop.xlane.xlu0 %923
        %925 = vmax.xlane.f32.xlu0 %v829
        %v926 = vpop.xlane.xlu0 %925
        %927 = vmax.xlane.f32.xlu0 %v832
        %v928 = vpop.xlane.xlu0 %927
        %v929 = vsub.f32 %v773, %v898
        %v930 = vsub.f32 %v776, %v900
        %v931 = vsub.f32 %v781, %v902
        %v932 = vsub.f32 %v784, %v904
        %v933 = vsub.f32 %v789, %v906
        %v934 = vsub.f32 %v792, %v908
        %v935 = vsub.f32 %v797, %v910
        %v936 = vsub.f32 %v800, %v912
        %v937 = vsub.f32 %v805, %v914
        %v938 = vsub.f32 %v808, %v916
        %v939 = vsub.f32 %v813, %v918
        %v940 = vsub.f32 %v816, %v920
        %v941 = vsub.f32 %v821, %v922
        %v942 = vsub.f32 %v824, %v924
        %v943 = vsub.f32 %v829, %v926
        %v944 = vsub.f32 %v832, %v928
        %v945 = vmul.f32 %v929, 1.442695
        %v946 = vpow.pop %v945
        %v947 = vmul.f32 %v930, 1.442695
        %v948 = vpow.pop %v947
        %v949 = vmul.f32 %v931, 1.442695
        %v950 = vpow.pop %v949
        %v951 = vmul.f32 %v932, 1.442695
        %v952 = vpow.pop %v951
        %v953 = vmul.f32 %v933, 1.442695
        %v954 = vpow.pop %v953
        %v955 = vmul.f32 %v934, 1.442695
        %v956 = vpow.pop %v955
        %v957 = vmul.f32 %v935, 1.442695
        %v958 = vpow.pop %v957
        %v959 = vmul.f32 %v936, 1.442695
        %v960 = vpow.pop %v959
        %v961 = vmul.f32 %v937, 1.442695
        %v962 = vpow.pop %v961
        %v963 = vmul.f32 %v938, 1.442695
        %v964 = vpow.pop %v963
        %v965 = vmul.f32 %v939, 1.442695
        %v966 = vpow.pop %v965
        %v967 = vmul.f32 %v940, 1.442695
        %v968 = vpow.pop %v967
        %v969 = vmul.f32 %v941, 1.442695
        %v970 = vpow.pop %v969
        %v971 = vmul.f32 %v942, 1.442695
        %v972 = vpow.pop %v971
        %v973 = vmul.f32 %v943, 1.442695
        %v974 = vpow.pop %v973
        %v975 = vmul.f32 %v944, 1.442695
        %v976 = vpow.pop %v975
        %977 = vadd.xlane.f32.xlu0 %v946
        %v978 = vpop.xlane.xlu0 %977
        %979 = vadd.xlane.f32.xlu0 %v948
        %v980 = vpop.xlane.xlu0 %979
        %981 = vadd.xlane.f32.xlu0 %v950
        %v982 = vpop.xlane.xlu0 %981
        %983 = vadd.xlane.f32.xlu0 %v952
        %v984 = vpop.xlane.xlu0 %983
        %985 = vadd.xlane.f32.xlu0 %v954
        %v986 = vpop.xlane.xlu0 %985
        %987 = vadd.xlane.f32.xlu0 %v956
        %v988 = vpop.xlane.xlu0 %987
        %989 = vadd.xlane.f32.xlu0 %v958
        %v990 = vpop.xlane.xlu0 %989
        %991 = vadd.xlane.f32.xlu0 %v960
        %v992 = vpop.xlane.xlu0 %991
        %993 = vadd.xlane.f32.xlu0 %v962
        %v994 = vpop.xlane.xlu0 %993
        %995 = vadd.xlane.f32.xlu0 %v964
        %v996 = vpop.xlane.xlu0 %995
        %997 = vadd.xlane.f32.xlu0 %v966
        %v998 = vpop.xlane.xlu0 %997
        %999 = vadd.xlane.f32.xlu0 %v968
        %v1000 = vpop.xlane.xlu0 %999
        %1001 = vadd.xlane.f32.xlu0 %v970
        %v1002 = vpop.xlane.xlu0 %1001
        %1003 = vadd.xlane.f32.xlu0 %v972
        %v1004 = vpop.xlane.xlu0 %1003
        %1005 = vadd.xlane.f32.xlu0 %v974
        %v1006 = vpop.xlane.xlu0 %1005
        %1007 = vadd.xlane.f32.xlu0 %v976
        %v1008 = vpop.xlane.xlu0 %1007
        %v1009 = vlog2.pop %v978
        %v1010 = vmul.f32 %v1009, 0.6931472
        %v1011 = vlog2.pop %v980
        %v1012 = vmul.f32 %v1011, 0.6931472
        %v1013 = vlog2.pop %v982
        %v1014 = vmul.f32 %v1013, 0.6931472
        %v1015 = vlog2.pop %v984
        %v1016 = vmul.f32 %v1015, 0.6931472
        %v1017 = vlog2.pop %v986
        %v1018 = vmul.f32 %v1017, 0.6931472
        %v1019 = vlog2.pop %v988
        %v1020 = vmul.f32 %v1019, 0.6931472
        %v1021 = vlog2.pop %v990
        %v1022 = vmul.f32 %v1021, 0.6931472
        %v1023 = vlog2.pop %v992
        %v1024 = vmul.f32 %v1023, 0.6931472
        %v1025 = vlog2.pop %v994
        %v1026 = vmul.f32 %v1025, 0.6931472
        %v1027 = vlog2.pop %v996
        %v1028 = vmul.f32 %v1027, 0.6931472
        %v1029 = vlog2.pop %v998
        %v1030 = vmul.f32 %v1029, 0.6931472
        %v1031 = vlog2.pop %v1000
        %v1032 = vmul.f32 %v1031, 0.6931472
        %v1033 = vlog2.pop %v1002
        %v1034 = vmul.f32 %v1033, 0.6931472
        %v1035 = vlog2.pop %v1004
        %v1036 = vmul.f32 %v1035, 0.6931472
        %v1037 = vlog2.pop %v1006
        %v1038 = vmul.f32 %v1037, 0.6931472
        %v1039 = vlog2.pop %v1008
        %v1040 = vmul.f32 %v1039, 0.6931472
        %v1041 = vsub.f32 %v929, %v1010
        %v1042 = vsub.f32 %v930, %v1012
        %v1043 = vsub.f32 %v931, %v1014
        %v1044 = vsub.f32 %v932, %v1016
        %v1045 = vsub.f32 %v933, %v1018
        %v1046 = vsub.f32 %v934, %v1020
        %v1047 = vsub.f32 %v935, %v1022
        %v1048 = vsub.f32 %v936, %v1024
        %v1049 = vsub.f32 %v937, %v1026
        %v1050 = vsub.f32 %v938, %v1028
        %v1051 = vsub.f32 %v939, %v1030
        %v1052 = vsub.f32 %v940, %v1032
        %v1053 = vsub.f32 %v941, %v1034
        %v1054 = vsub.f32 %v942, %v1036
        %v1055 = vsub.f32 %v943, %v1038
        %v1056 = vsub.f32 %v944, %v1040
        %s1057 = scalar_lea.vmem %s5, %s237
        %1058 = vst [vmem:[%s1057] sm:$0xff] %v1041
        %1059 = vst [vmem:[%s1057 + $0x8] sm:$0xff] %v1042
        %1060 = vst [vmem:[%s1057 + $0x10] sm:$0xff] %v1043
        %1061 = vst [vmem:[%s1057 + $0x18] sm:$0xff] %v1044
        %1062 = vst [vmem:[%s1057 + $0x20] sm:$0xff] %v1045
        %1063 = vst [vmem:[%s1057 + $0x28] sm:$0xff] %v1046
        %1064 = vst [vmem:[%s1057 + $0x30] sm:$0xff] %v1047
        %1065 = vst [vmem:[%s1057 + $0x38] sm:$0xff] %v1048
        %1066 = vst [vmem:[%s1057 + $0x40] sm:$0xff] %v1049
        %1067 = vst [vmem:[%s1057 + $0x48] sm:$0xff] %v1050
        %1068 = vst [vmem:[%s1057 + $0x50] sm:$0xff] %v1051
        %1069 = vst [vmem:[%s1057 + $0x58] sm:$0xff] %v1052
        %1070 = vst [vmem:[%s1057 + $0x60] sm:$0xff] %v1053
        %1071 = vst [vmem:[%s1057 + $0x68] sm:$0xff] %v1054
        %1072 = vst [vmem:[%s1057 + $0x70] sm:$0xff] %v1055
        %1073 = vst [vmem:[%s1057 + $0x78] sm:$0xff] %v1056
      $region52: #{gcn_forward.1} parent=39 // pred_fallthru
        _
      // Predicated region
      $region53: #{gcn_forward.1} parent=39 // pred_check
        %p1074 = pneg %p156
      $region54: #{gcn_forward.1} parent=39 // pred_check_branch
        %1076 = sbr.rel (%p1074) target = $region56
      $region55: #{gcn_forward.1} parent=39 // pred_region
        _
      $region56: #{gcn_forward.1} parent=39 // pred_fallthru
        _
      // Predicated region
      $region57: #{gcn_forward.1} parent=39 // pred_check
        %p1077 = pneg %p156
      $region58: #{gcn_forward.1} parent=39 // pred_check_branch
        %1079 = sbr.rel (%p1077) target = $region60
      $region59: #{gcn_forward.1} parent=39 // pred_region
        _
      $region60: #{gcn_forward.1} parent=39 // pred_fallthru
        _
    $region40: #{gcn_forward.1} parent=5 // pred_fallthru
      _
    %p1080 = scmp.le.s32.totalorder 2, %s11
    // Predicated region
    $region61: #{gcn_forward.1} parent=5 // pred_check
      %p1081 = pneg %p1080
    $region62: #{gcn_forward.1} parent=5 // pred_check_branch
      %1083 = sbr.rel (%p1081) target = $region64
    $region63: #{gcn_forward.1} parent=5 // pred_region
      %s1084 = ssub.s32 %s11, 2
    $region64: #{gcn_forward.1} parent=5 // pred_fallthru
      _
  $region6: #{gcn_forward.1} parent=0 // loop_footer
    %s15 = sadd.s32 1, %s11
  $region7: #{gcn_forward.1} parent=0 // loop_footer_branch
    %10 = sbr.rel target = $region3
  $region8: #{gcn_forward.1} parent=0 // loop_exit
    _

</llo_original>
